<compile_context>
chip_gen: v5e
topology: v5e:2x2
jax: 0.10.0
libtpu: 0.0.40
codegen_flags: <defaults>
</compile_context>

<pallas_src>
import math
from functools import partial

import jax
import jax.numpy as jnp
from jax.experimental import pallas as pl
from jax.experimental.pallas import tpu as pltpu


def _cdiv(a: int, b: int) -> int:
    return -(-a // b)


def _round_up(a: int, b: int) -> int:
    return _cdiv(a, b) * b


def _make_kernel(dim: int):
    def kernel(freq_ref, phase_ref, x_ref, out_ref):
        # freq_ref/phase_ref: (1, lane) f32 constants (lane = fold * dim)
        # x_ref:              (tb, fold) f32 packed positions
        # out_ref:            (tb, lane)
        x_rep = jnp.repeat(x_ref[...], dim, axis=1)            # (tb, lane), lane expand on XLU
        emb = x_rep * freq_ref[...] + phase_ref[...]           # VPU; tables sublane-broadcast
        out_ref[...] = jnp.sin(emb).astype(out_ref.dtype)      # one EUP pass, full-width store
    return kernel


@partial(jax.jit, static_argnames=("dim", "max_period", "out_dtype"))
def sinusoidal_pos_emb(x: jax.Array, dim: int, max_period: float = 10000.0,
                       out_dtype=jnp.float32) -> jax.Array:
    """Pallas TPU implementation of SinusoidalPosEmb.forward for 1-D x."""
    assert x.ndim == 1, "this wrapper handles 1-D x (the common case)"
    assert dim % 2 == 0, "dim must be even (torch version silently drops a column)"
    assert dim >= 4, "dim must be >= 4 (half_dim - 1 must be > 0)"

    B = x.shape[0]
    half_dim = dim // 2

    # Lane-dense folding: lane = lcm(dim, 128) so output stores are unmasked.
    lane = dim * (128 // math.gcd(dim, 128))
    if lane > 2048:            # pathological dim: fall back to unfolded (masked tail stores)
        lane = dim
    fold = lane // dim

    b_pad = _round_up(B, fold)          # pad only to fold granularity (at most fold-1 rows)
    rows = b_pad // fold

    # Row tile: ~2 MiB output blocks (4 MiB double-buffered), multiple of 16 rows;
    # force >= 2 grid steps when rows >= 32 so v7x megacore can split the grid.
    tb_cap = max(16, ((2 * 1024 * 1024) // (lane * 4)) // 16 * 16)
    if rows < 32:
        tb = rows                                        # single block == full array
    else:
        tb = min(tb_cap, _round_up(_cdiv(rows, 2), 16))
    grid = _cdiv(rows, tb)

    # Packed positions (padding rows are clipped / sliced away).
    x_f32 = x.astype(jnp.float32)
    if b_pad != B:
        x_f32 = jnp.pad(x_f32, (0, b_pad - B))
    x2d = x_f32.reshape(rows, fold)

    # Hoisted lane-wide tables; freqs uses the exact reference/torch formula.
    scale = math.log(max_period) / (half_dim - 1)
    freqs = jnp.exp(jnp.arange(half_dim, dtype=jnp.float32) * -scale)        # (half_dim,)
    freq_row = jnp.tile(jnp.concatenate([freqs, freqs]), fold)[None, :]      # (1, lane)
    phase_row = jnp.tile(
        jnp.concatenate([jnp.zeros((half_dim,), jnp.float32),
                         jnp.full((half_dim,), math.pi / 2, jnp.float32)]),
        fold)[None, :]                                                       # (1, lane)

    out_folded = pl.pallas_call(
        _make_kernel(dim),
        out_shape=jax.ShapeDtypeStruct((rows, lane), out_dtype),
        grid=(grid,),
        in_specs=[
            pl.BlockSpec((1, lane), lambda i: (0, 0)),      # freq table (constant block)
            pl.BlockSpec((1, lane), lambda i: (0, 0)),      # phase table (constant block)
            pl.BlockSpec((tb, fold), lambda i: (i, 0)),     # packed positions
        ],
        out_specs=pl.BlockSpec((tb, lane), lambda i: (i, 0)),
        compiler_params=pltpu.CompilerParams(dimension_semantics=("parallel",)),
    )(freq_row, phase_row, x2d)

    # (rows, fold*dim) row-major == (rows*fold, dim): free reshape; slice only if ragged.
    out = out_folded.reshape(rows * fold, dim)
    return out if b_pad == B else out[:B]


def _reference(x: jax.Array, dim: int, max_period: float = 10000.0) -> jax.Array:
    half_dim = dim // 2
    scale = math.log(max_period) / (half_dim - 1)
    freqs = jnp.exp(jnp.arange(half_dim, dtype=jnp.float32) * -scale)
    emb = x.astype(jnp.float32)[:, None] * freqs[None, :]
    return jnp.concatenate([jnp.sin(emb), jnp.cos(emb)], axis=-1)


def _check(x, dim):
    out = jax.block_until_ready(sinusoidal_pos_emb(x, dim=dim))
    ref = _reference(x, dim)
    assert out.shape == ref.shape, f"shape mismatch {out.shape} vs {ref.shape}"
    # cos is computed as sin(t + pi/2); at |t| ~ 1e3 the f32 argument rounding
    # is ~6e-5, so allow 1e-3 (structural/packing bugs would be O(1)).
    assert jnp.allclose(out, ref, atol=1e-3, rtol=1e-3), f"mismatch (dim={dim}, B={x.shape[0]})"
    return out


if __name__ == "__main__":
    key = jax.random.PRNGKey(0)
    k1, k2, k3 = jax.random.split(key, 3)

    # Diffusion timestep embedding: small batches of timesteps in [0, 1000).
    _check(jax.random.uniform(k1, (8,), jnp.float32, 0.0, 1000.0), dim=32)    # fold=4
    _check(jax.random.uniform(k2, (37,), jnp.float32, 0.0, 1000.0), dim=128)  # fold=1, ragged tiles
    _check(jax.random.uniform(k3, (10,), jnp.float32, 0.0, 1000.0), dim=96)   # lcm fold, B % fold != 0

    print("KERNEL_OK")
</pallas_src>

<mosaic_0001>
module attributes {stable_mosaic.version = 11 : i64} {
  func.func @kernel(%arg0: i32, %arg1: memref<1x128xf32, #tpu.memory_space<vmem>>, %arg2: memref<1x128xf32, #tpu.memory_space<vmem>>, %arg3: memref<2x4xf32, #tpu.memory_space<vmem>>, %arg4: memref<2x128xf32, #tpu.memory_space<vmem>>) attributes {dimension_semantics = [#tpu.dimension_semantics<parallel>], iteration_bounds = array<i64: 1>, scalar_prefetch = 0 : i64, scratch_operands = 0 : i64, tpu.core_type = #tpu.core_type<tc>, window_params = [{pipeline_mode = #tpu.pipeline_mode<synchronous>, transform_indices = @transform_0, window_bounds = array<i64: 1, 128>}, {pipeline_mode = #tpu.pipeline_mode<synchronous>, transform_indices = @transform_1, window_bounds = array<i64: 1, 128>}, {transform_indices = @transform_2, window_bounds = array<i64: 2, 4>}, {transform_indices = @transform_3, window_bounds = array<i64: 2, 128>}]} {
    %c0 = arith.constant 0 : index
    %c0_0 = arith.constant 0 : index
    %0 = vector.load %arg3[%c0, %c0_0] : memref<2x4xf32, #tpu.memory_space<vmem>>, vector<2x4xf32>
    %1 = vector.shape_cast %0 : vector<2x4xf32> to vector<2x4x1xf32>
    %2 = vector.broadcast %1 : vector<2x4x1xf32> to vector<2x4x32xf32>
    %3 = vector.shape_cast %2 : vector<2x4x32xf32> to vector<2x128xf32>
    %c0_1 = arith.constant 0 : index
    %c0_2 = arith.constant 0 : index
    %4 = vector.load %arg1[%c0_1, %c0_2] : memref<1x128xf32, #tpu.memory_space<vmem>>, vector<1x128xf32>
    %5 = vector.broadcast %4 : vector<1x128xf32> to vector<2x128xf32>
    %6 = arith.mulf %3, %5 : vector<2x128xf32>
    %c0_3 = arith.constant 0 : index
    %c0_4 = arith.constant 0 : index
    %7 = vector.load %arg2[%c0_3, %c0_4] : memref<1x128xf32, #tpu.memory_space<vmem>>, vector<1x128xf32>
    %8 = vector.broadcast %7 : vector<1x128xf32> to vector<2x128xf32>
    %9 = arith.addf %6, %8 : vector<2x128xf32>
    %10 = math.sin %9 : vector<2x128xf32>
    %c0_5 = arith.constant 0 : index
    %c0_6 = arith.constant 0 : index
    %11 = vector.load %arg4[%c0_5, %c0_6] : memref<2x128xf32, #tpu.memory_space<vmem>>, vector<2x128xf32>
    tpu.vector_store %arg4[%c0_5, %c0_6], %10 {strides = array<i32>} : memref<2x128xf32, #tpu.memory_space<vmem>>, vector<2x128xf32>,
    return
  }
  func.func @transform_0(%arg0: i32) -> (i32, i32) {
    %c0_i32 = arith.constant 0 : i32
    %c0_i32_0 = arith.constant 0 : i32
    %c0_i32_1 = arith.constant 0 : i32
    return %c0_i32, %c0_i32_0 : i32, i32
  }
  func.func @transform_1(%arg0: i32) -> (i32, i32) {
    %c0_i32 = arith.constant 0 : i32
    %c0_i32_0 = arith.constant 0 : i32
    %c0_i32_1 = arith.constant 0 : i32
    return %c0_i32, %c0_i32_0 : i32, i32
  }
  func.func @transform_2(%arg0: i32) -> (i32, i32) {
    %c0_i32 = arith.constant 0 : i32
    %c0_i32_0 = arith.constant 0 : i32
    return %arg0, %c0_i32 : i32, i32
  }
  func.func @transform_3(%arg0: i32) -> (i32, i32) {
    %c0_i32 = arith.constant 0 : i32
    %c0_i32_0 = arith.constant 0 : i32
    return %arg0, %c0_i32 : i32, i32
  }
}

</mosaic_0001>

<llo_original>
// kernel: tile.12
$region0: #{tile.12}
  #allocation0 [shape = 's32[1]{0}', space=sflag, size = 0x4, scoped, tag = 'scoped memory for tile.12']
  %s0 = inlined_call_operand.vmem [shape: f32[32], index: 0, kind: input, shape index: {}]
  %s1 = inlined_call_operand.vmem [shape: f32[4,32], index: 1, kind: output, shape index: {}]
  // Predicated region
  $region2: #{tile.12} parent=0 // pred_check
    _
  $region3: #{tile.12} parent=0 // pred_check_branch
    %3 = sbr.rel (0) target = $region5
  $region4: #{tile.12} parent=0 // pred_region
    _
  $region5: #{tile.12} parent=0 // pred_fallthru
    _
  %v4 = vld [vmem:[%s0] ss:$0 sm:$0xff]
  %5 = vst [vmem:[%s1] sm:$0xf] %v4

// kernel: tile.13
$region0: #{tile.13}
  %s0 = inlined_call_operand.vmem [shape: f32[4,32], index: 0, kind: input, shape index: {}]
  %s1 = inlined_call_operand.vmem [shape: f32[1,128], index: 1, kind: output, shape index: {}]
  $region1: #{tile.13} parent=0
    #allocation0 [shape = 'u8[4096]{0}', space=vmem, size = 0x1000, scoped, tag = 'scoped mem for output reshape']
    #allocation1 [shape = 'u8[4096]{0}', space=vmem, size = 0x1000, scoped, tag = 'scoped mem for input reshape']
    %s3 = ssub.s32 16, 1
    %v4 = vld [vmem:[%s0] sm:%s3]
    %5 = vst [vmem:[#allocation1] sm:%s3] %v4
    %v6 = vld [vmem:[#allocation1] sm:$0x1]
    %vm7 = vcmask 261120
    %8 = vst.msk [vmem:[#allocation0] sm:$0x1] %vm7, %v6
    %s9 = scalar_lea.vmem [#allocation1], 3
    %v10 = vld [vmem:[%s9] sm:$0x1]
    %11 = vrot.lane.b32.xlu0 %v10, 96
    %v12 = vpop.permute.xlu0 %11
    %vm13 = vcmask 1048320
    %14 = vst.msk [vmem:[#allocation0] sm:$0x1] %vm13, %v12
    %s15 = scalar_lea.vmem [#allocation1], 2
    %v16 = vld [vmem:[%s15] sm:$0x1]
    %17 = vrot.lane.b32.xlu0 %v16, 64
    %v18 = vpop.permute.xlu0 %17
    %vm19 = vcmask 785920
    %20 = vst.msk [vmem:[#allocation0] sm:$0x1] %vm19, %v18
    %s21 = scalar_lea.vmem [#allocation1], 1
    %v22 = vld [vmem:[%s21] sm:$0x1]
    %23 = vrot.lane.b32.xlu0 %v22, 32
    %v24 = vpop.permute.xlu0 %23
    %vm25 = vcmask 523520
    %26 = vst.msk [vmem:[#allocation0] sm:$0x1] %vm25, %v24
    %s28 = ssub.s32 2, 1
    %v29 = vld [vmem:[#allocation0] sm:%s28]
    %s31 = ssub.s32 2, 1
    %32 = vst [vmem:[%s1] sm:%s31] %v29

// kernel: sinusoidal_pos_emb.1
$region0: #{sinusoidal_pos_emb.1}
  #allocation0 [shape = 'u32[]', space=smem, size = 0x4, offset = 0x4, fixed_abs, tag = 'smem constant byte address 0x4 - core index']
  #allocation1 [shape = 'u32[72,128]{1,0:T(1,128)}', space=vmem, size = 0x9000, scoped, tag = 'internal scratch']
  %s0 = inlined_call_operand.vmem [shape: f32[1,128], index: 0, kind: input, shape index: {}]
  %s1 = inlined_call_operand.vmem [shape: f32[1,128], index: 1, kind: input, shape index: {}]
  %s2 = inlined_call_operand.vmem [shape: f32[2,4], index: 2, kind: input, shape index: {}]
  %s3 = inlined_call_operand.vmem [shape: f32[2,128], index: 3, kind: output, shape index: {}]
  %s4 = sld [smem:[#allocation0]]
  $region22: #{sinusoidal_pos_emb.1} parent=0
    _
  %s6 = ssub.s32 1, %s4
  %s7 = scalar_select 0, %s6, %s4
  // Predicated region
  $region2: #{sinusoidal_pos_emb.1} parent=0 // pred_check
    _
  $region3: #{sinusoidal_pos_emb.1} parent=0 // pred_check_branch
    %9 = sbr.rel (0) target = $region5
  $region4: #{sinusoidal_pos_emb.1} parent=0 // pred_region
    _
  $region5: #{sinusoidal_pos_emb.1} parent=0 // pred_fallthru
    _
  // Predicated region
  $region6: #{sinusoidal_pos_emb.1} parent=0 // pred_check
    _
  $region7: #{sinusoidal_pos_emb.1} parent=0 // pred_check_branch
    %11 = sbr.rel (0) target = $region9
  $region8: #{sinusoidal_pos_emb.1} parent=0 // pred_region
    _
  $region9: #{sinusoidal_pos_emb.1} parent=0 // pred_fallthru
    _
  // Predicated region
  $region10: #{sinusoidal_pos_emb.1} parent=0 // pred_check
    _
  $region11: #{sinusoidal_pos_emb.1} parent=0 // pred_check_branch
    %13 = sbr.rel (0) target = $region13
  $region12: #{sinusoidal_pos_emb.1} parent=0 // pred_region
    _
  $region13: #{sinusoidal_pos_emb.1} parent=0 // pred_fallthru
    _
  %v14 = vld [vmem:[%s2] sm:$0x3]
  %v15 = vperm.slane %v14, 0
  %v16 = vperm.slane %v14, 1
  %v17 = vlaneseq
  %v18 = vshrl.u32 %v17, 7
  %20 = vset.pattern.permute.xlu0 %v18
  %21 = vperm.xlu0 %20, %v15
  %v22 = vpop.permute.xlu0 %21
  %v24 = vunpack.c.l.s4 1983009808
  %v25 = vunpack.c.0.s8 %v24
  %v26 = vperm.slane %v22, %v25
  %v27 = vlaneseq
  %v28 = vshrl.u32 %v27, 7
  %30 = vset.pattern.permute.xlu0 %v28
  %31 = vperm.xlu0 %30, %v16
  %v32 = vpop.permute.xlu0 %31
  %v34 = vunpack.c.l.s4 1983009808
  %v35 = vunpack.c.0.s8 %v34
  %v36 = vperm.slane %v32, %v35
  %v37 = vrot.slane %v36, 4
  %vm38 = vcmask 1047556
  %v39 = vsel %vm38, %v37, %v26
  %v40 = vrot.slane %v26, 4
  %v41 = vsel %vm38, %v36, %v40
  %v43 = vunpack.c.l.s4 1934713408
  %v44 = vunpack.c.0.s8 %v43
  %v45 = vperm.slane %v39, %v44
  %v47 = vunpack.c.l.s4 1934713408
  %v48 = vunpack.c.0.s8 %v47
  %v49 = vperm.slane %v41, %v48
  %v50 = vrot.slane %v45, 4
  %v51 = vsel %vm38, 0.0, %v50
  %v52 = vrot.slane %v49, 4
  %v53 = vsel %vm38, 0.0, %v52
  %55 = vrot.lane.b32.xlu0 %v51, 32
  %v56 = vpop.permute.xlu0 %55
  %59 = vrot.lane.b32.xlu0 %v49, 64
  %v60 = vpop.permute.xlu0 %59
  %63 = vrot.lane.b32.xlu0 %v53, 96
  %v64 = vpop.permute.xlu0 %63
  %vm66 = vcmask 261120
  %v67 = vsel %vm66, %v45, %v56
  %vm68 = vcmask 523264
  %v69 = vsel %vm68, %v67, %v60
  %vm70 = vcmask 785408
  %v71 = vsel %vm70, %v69, %v64
  %v72 = vld [vmem:[%s0] sm:$0x1]
  %v74 = vperm.slane %v72, 0
  %v76 = vmul.f32 %v71, %v74
  %v77 = vld [vmem:[%s1] sm:$0x1]
  %v79 = vperm.slane %v77, 0
  %v81 = vadd.f32 %v76, %v79
  %v82 = vand.u32 2147483647, %v81
  %vm83 = vcmp.le.f32.partialorder %v82, 0.7853982
  %vm84 = vcmp.lt.s32.totalorder %v81, 0
  %v85 = vand.u32 %v81, 2139095040
  %v86 = vshrl.u32 %v85, 23
  %v87 = vsub.s32 %v86, 127
  %v88 = vand.u32 2147483647, %v81
  %v89 = vand.u32 %v88, 8388607
  %v90 = vor.u32 %v89, 8388608
  %v91 = vsub.s32 0, %v90
  %v92 = vadd.s32 %v87, 1
  %vm93 = vcmp.gt.s32.totalorder %v92, 0
  %v94 = vsel %vm93, %v92, 0
  %v95 = vshrl.u32 %v94, 5
  %v96 = vand.u32 %v94, 31
  %v97 = vsub.s32 32, %v96
  %v98 = vshrl.u32 683565275, %v97
  %v99 = vshll.u32 683565275, %v96
  %v100 = vshrl.u32 2475754826, %v97
  %v101 = vor.u32 %v99, %v100
  %v102 = vshll.u32 2475754826, %v96
  %v103 = vshrl.u32 2131351028, %v97
  %v104 = vor.u32 %v102, %v103
  %v105 = vshll.u32 2131351028, %v96
  %v106 = vshrl.u32 2102212464, %v97
  %v107 = vor.u32 %v105, %v106
  %v108 = vshll.u32 2102212464, %v96
  %v109 = vshrl.u32 920167782, %v97
  %v110 = vor.u32 %v108, %v109
  %v111 = vshll.u32 920167782, %v96
  %v112 = vshrl.u32 1326507024, %v97
  %v113 = vor.u32 %v111, %v112
  %vm114 = vcmp.lt.s32.totalorder %v95, 1
  %vm115 = vcmp.lt.s32.totalorder %v95, 2
  %vm116 = vcmp.lt.s32.totalorder %v95, 3
  %vm117 = vcmp.lt.s32.totalorder %v95, 4
  %v118 = vsel %vm114, %v98, %v101
  %v119 = vsel %vm117, %v107, 2102212464
  %v120 = vsel %vm116, %v104, %v119
  %v121 = vsel %vm115, %v118, %v120
  %v122 = vsel %vm114, %v101, %v104
  %v123 = vsel %vm117, %v110, 920167782
  %v124 = vsel %vm116, %v107, %v123
  %v125 = vsel %vm115, %v122, %v124
  %v126 = vsel %vm114, %v104, %v107
  %v127 = vsel %vm117, %v113, 1326507024
  %v128 = vsel %vm116, %v110, %v127
  %v129 = vsel %vm115, %v126, %v128
  %v130 = vshll.u32 %v90, 8
  %v131 = vand.u32 %v130, 65535
  %v132 = vshrl.u32 %v130, 16
  %v133 = vand.u32 %v129, 65535
  %v134 = vshrl.u32 %v129, 16
  %v135 = vmul.u32 %v131, %v133
  %v136 = vmul.u32 %v131, %v134
  %v137 = vmul.u32 %v132, %v133
  %v138 = vmul.u32 %v132, %v134
  %v139 = vshll.u32 %v136, 16
  %v140 = vshrl.u32 %v136, 16
  %v141 = vshll.u32 %v137, 16
  %v142 = vshrl.u32 %v137, 16
  %vm143 = vc.u32 %v135, %v139
  %v144 = vsel %vm143, 1, 0
  %v145 = vadd.s32 %v135, %v139
  %v146 = vadd.s32 %v138, %v144
  %vm147 = vc.u32 %v145, %v141
  %v148 = vsel %vm147, 1, 0
  %v149 = vadd.s32 %v145, %v141
  %v150 = vadd.s32 %v146, %v148
  %v151 = vadd.s32 %v150, %v140
  %v152 = vadd.s32 %v151, %v142
  %v153 = vand.u32 %v130, 65535
  %v154 = vshrl.u32 %v130, 16
  %v155 = vand.u32 %v125, 65535
  %v156 = vshrl.u32 %v125, 16
  %v157 = vmul.u32 %v153, %v155
  %v158 = vmul.u32 %v153, %v156
  %v159 = vmul.u32 %v154, %v155
  %v160 = vmul.u32 %v154, %v156
  %v161 = vshll.u32 %v158, 16
  %v162 = vshrl.u32 %v158, 16
  %v163 = vshll.u32 %v159, 16
  %v164 = vshrl.u32 %v159, 16
  %vm165 = vc.u32 %v157, %v161
  %v166 = vsel %vm165, 1, 0
  %v167 = vadd.s32 %v157, %v161
  %v168 = vadd.s32 %v160, %v166
  %vm169 = vc.u32 %v167, %v163
  %v170 = vsel %vm169, 1, 0
  %v171 = vadd.s32 %v167, %v163
  %v172 = vadd.s32 %v168, %v170
  %v173 = vadd.s32 %v172, %v162
  %v174 = vadd.s32 %v173, %v164
  %v175 = vmul.u32 %v130, %v121
  %v176 = vadd.s32 %v152, %v171
  %vm177 = vc.u32 %v152, %v171
  %v178 = vadd.s32 %v174, 1
  %v179 = vsel %vm177, %v178, %v174
  %v180 = vadd.s32 %v175, %v179
  %v181 = vadd.s32 %v180, 536870912
  %v182 = vshrl.u32 %v181, 30
  %v183 = vshll.u32 %v182, 30
  %v184 = vsub.s32 %v180, %v183
  %vm185 = vcmp.lt.s32.totalorder %v184, 0
  %v186 = vsub.s32 0, %v184
  %v187 = vsel %vm185, %v186, %v184
  %v188 = vclz %v187
  %v189 = vsub.s32 %v188, 2
  %vm190 = vcmp.gt.s32.totalorder 0, %v189
  %v191 = vsel %vm190, 0, %v189
  %v192 = vsub.s32 32, %v191
  %v193 = vshll.u32 %v184, %v191
  %v194 = vshrl.u32 %v176, %v192
  %v195 = vor.u32 %v193, %v194
  %v196 = vsub.s32 4294967266, %v191
  %v197 = vadd.s32 %v196, 127
  %v198 = vshll.u32 %v197, 23
  %v199 = vor.u32 4788187, %v198
  %v200 = vand.u32 2147483647, %v199
  %v202 = vcvt.s32.f32 %v195
  %v203 = vmul.f32 %v202, %v200
  %v204 = vxor.u32 %v203, 2147483648
  %v205 = vsel %vm84, %v204, %v203
  %v206 = vsub.s32 4, %v182
  %v207 = vsel %vm84, %v206, %v182
  %v208 = vsel %vm83, %v81, %v205
  %v209 = vsel %vm83, 0, %v207
  %v210 = vmul.f32 %v208, %v208
  %v211 = vmul.f32 %v210, -0.001358992
  %v212 = vadd.f32 %v211, 0.041655596
  %v213 = vmul.f32 %v210, %v212
  %v214 = vadd.f32 %v213, -0.4999988
  %v215 = vmul.f32 %v210, %v214
  %v216 = vadd.f32 1.0, %v215
  %v217 = vmul.f32 %v208, %v208
  %v218 = vmul.f32 %v217, -0.00019511016
  %v219 = vadd.f32 %v218, 0.008332121
  %v220 = vmul.f32 %v217, %v219
  %v221 = vadd.f32 %v220, -0.16666654
  %v222 = vmul.f32 %v217, %v221
  %v223 = vadd.f32 %v222, 1.0
  %v224 = vmul.f32 %v223, %v208
  %vm225 = vweird.f32 %v81
  %v226 = vadd.s32 %v209, 3
  %v227 = vand.u32 %v226, 3
  %vm228 = vcmp.lt.s32.totalorder %v227, 2
  %vm229 = vcmp.eq.s32.totalorder %v227, 0
  %v230 = vxor.u32 %v224, 2147483648
  %v231 = vsel %vm229, %v216, %v230
  %vm232 = vcmp.eq.s32.totalorder %v227, 2
  %v233 = vxor.u32 %v216, 2147483648
  %v234 = vsel %vm232, %v233, %v224
  %v235 = vsel %vm228, %v231, %v234
  %v236 = vsel %vm225, nan, %v235
  %237 = vst [vmem:[%s3] sm:$0x3] %v236
  // Predicated region
  $region14: #{sinusoidal_pos_emb.1} parent=0 // pred_check
    _
  $region15: #{sinusoidal_pos_emb.1} parent=0 // pred_check_branch
    %239 = sbr.rel (0) target = $region17
  $region16: #{sinusoidal_pos_emb.1} parent=0 // pred_region
    _
  $region17: #{sinusoidal_pos_emb.1} parent=0 // pred_fallthru
    _
  // Predicated region
  $region18: #{sinusoidal_pos_emb.1} parent=0 // pred_check
    _
  $region19: #{sinusoidal_pos_emb.1} parent=0 // pred_check_branch
    %241 = sbr.rel (0) target = $region21
  $region20: #{sinusoidal_pos_emb.1} parent=0 // pred_region
    _
  $region21: #{sinusoidal_pos_emb.1} parent=0 // pred_fallthru
    _

</llo_original>
